<compile_context>
chip_gen: v7x
topology: tpu7x:2x2x1
jax: 0.10.0
libtpu: 0.0.40
codegen_flags: <defaults>
</compile_context>

<pallas_src>
import math

import jax
import jax.numpy as jnp
from jax.experimental import pallas as pl
from jax.experimental.pallas import tpu as pltpu


def make_hl_gauss_loss_kernel(inv_c: float, total_rows: int, tb: int):
    needs_mask = (total_rows % tb) != 0

    def kernel(logits_ref, side_ref, hi_ref, out_ref):
        x = logits_ref[...].astype(jnp.float32)              # (TB, N)
        side = side_ref[...]                                  # (TB, 2) f32
        t = side[:, 0:1]                                      # clipped target      (TB, 1)
        inv_z = side[:, 1:2]                                  # 1/(cdf_max-cdf_min) (TB, 1)

        # Right-bin-edge CDF: the only (TB, N) transcendental in the kernel.
        # (hi - t) is formed before scaling by inv_c to avoid cancellation of two
        # already-rounded large products near the support edges.
        cdf_hi = jax.lax.erf((hi_ref[...] - t) * inv_c)       # (TB, N)

        # Left edges via a lane roll (XLU); the lane-0 wraparound (cdf_max instead of
        # cdf_min) is corrected exactly by the "- x0" term below (the error is z * x0).
        diff = cdf_hi - pltpu.roll(cdf_hi, shift=1, axis=1)   # (TB, N)

        m = jnp.max(x, axis=-1, keepdims=True)                # (TB, 1)
        sumexp = jnp.sum(jnp.exp(x - m), axis=-1, keepdims=True)
        weighted = jnp.sum(diff * x, axis=-1, keepdims=True)  # (TB, 1)
        lse = m + jnp.log(sumexp)
        x0 = x[:, 0:1]

        # Soft-label CE per row (sum_k probs_k == 1):
        #   -sum_k probs_k * (x_k - lse) == lse - (sum_k diff_true_k * x_k)/z
        #                                == lse - weighted_rolled * inv_z - x0
        per_row = lse - weighted * inv_z - x0                 # (TB, 1)

        if needs_mask:
            row = jax.lax.broadcasted_iota(jnp.int32, (tb, 1), 0)
            valid = (pl.program_id(0) * tb + row) < total_rows
            per_row = jnp.where(valid, per_row, 0.0)

        # One partial sum per grid step -> distinct output block -> "parallel" axis is legal.
        out_ref[...] = jnp.sum(per_row, keepdims=True).reshape(1, 1, 1)

    return kernel


def hl_gauss_loss(logits: jax.Array, target: jax.Array, *,
                  min_value: float, max_value: float,
                  n_logits: int, sigma: float,
                  block_rows: int = 4096) -> jax.Array:
    """logits: (B, n_logits) f32/bf16, target: (B,) -> scalar f32 soft-target CE loss."""
    B, N = logits.shape
    assert N == n_logits
    inv_c = 1.0 / (math.sqrt(2.0) * sigma)

    itemsize = jnp.dtype(logits.dtype).itemsize
    rows_align = {4: 8, 2: 16, 1: 32}.get(itemsize, 8)
    if B <= block_rows:
        tb = B                                   # full-extent block: always legal
    else:
        tb = max(rows_align, (block_rows // rows_align) * rows_align)
    num_tiles = pl.cdiv(B, tb)

    # Bin edges: support = linspace(min, max, N+1); only the right edges go to the kernel
    # (left edges are recovered in-kernel via the lane roll + algebraic lane-0 correction).
    support = jnp.linspace(min_value, max_value, n_logits + 1, dtype=jnp.float32)
    hi = support[1:].reshape(1, N)

    # Lane-dense per-row prologue on the (B,)-sized target (tiny vs the (B,N) logits):
    # clip, min/max-edge erfs, and 1/z, packed into a single (B, 2) side stream.
    t = jnp.clip(target.astype(jnp.float32), min_value, max_value)
    cdf_min = jax.lax.erf((min_value - t) * inv_c)
    cdf_max = jax.lax.erf((max_value - t) * inv_c)
    inv_z = 1.0 / (cdf_max - cdf_min)
    side = jnp.stack([t, inv_z], axis=-1)        # (B, 2) f32

    kernel = make_hl_gauss_loss_kernel(inv_c, B, tb)

    # Budget VMEM for double-buffered logits + side tiles plus (TB,N) f32 intermediates.
    vmem_limit = int(min(96 << 20, max(32 << 20, 10 * tb * max(N, 128) * 4)))

    partials = pl.pallas_call(
        kernel,
        out_shape=jax.ShapeDtypeStruct((num_tiles, 1, 1), jnp.float32),
        grid=(num_tiles,),
        in_specs=[
            pl.BlockSpec((tb, N), lambda i: (i, 0)),   # logits tile (double-buffered DMA)
            pl.BlockSpec((tb, 2), lambda i: (i, 0)),   # [clipped target, 1/z] side stream
            pl.BlockSpec((1, N), lambda i: (0, 0)),    # right bin edges (resident)
        ],
        out_specs=pl.BlockSpec((1, 1, 1), lambda i: (i, 0, 0)),   # per-tile partial sum
        compiler_params=pltpu.CompilerParams(
            dimension_semantics=("parallel",),          # megacore-shardable on v7x
            vmem_limit_bytes=vmem_limit),
    )(logits, side, hi)

    return jnp.sum(partials) / jnp.float32(B)


def _reference_loss(logits, target, *, min_value, max_value, n_logits, sigma):
    """Pure-JAX reference mirroring the PyTorch module."""
    support = jnp.linspace(min_value, max_value, n_logits + 1, dtype=jnp.float32)
    t = jnp.clip(target.astype(jnp.float32), min_value, max_value)
    cdf = jax.lax.erf((support[None, :] - t[:, None]) /
                      (jnp.sqrt(jnp.float32(2.0)) * sigma))
    z = cdf[:, -1] - cdf[:, 0]
    probs = (cdf[:, 1:] - cdf[:, :-1]) / z[:, None]
    log_sm = jax.nn.log_softmax(logits.astype(jnp.float32), axis=-1)
    return jnp.mean(-jnp.sum(probs * log_sm, axis=-1))


if __name__ == "__main__":
    # Deterministic synthetic setup (no checkpoint load).
    MIN_V, MAX_V = -1.0, 1.0
    N_LOGITS = 128
    SIGMA = 0.75 * (MAX_V - MIN_V) / N_LOGITS

    key = jax.random.PRNGKey(0)
    cases = [
        dict(B=2, block_rows=4096, dtype=jnp.float32),    # tiny single tile
        dict(B=10, block_rows=4096, dtype=jnp.float32),   # non-multiple-of-8 single tile
        dict(B=300, block_rows=128, dtype=jnp.float32),   # multi-tile + ragged mask path
        dict(B=300, block_rows=128, dtype=jnp.bfloat16),  # bf16 logits, 16-aligned tiles
    ]
    for case in cases:
        key, k1, k2 = jax.random.split(key, 3)
        logits = jax.random.normal(k1, (case["B"], N_LOGITS), dtype=jnp.float32)
        logits = logits.astype(case["dtype"])
        target = jax.random.uniform(k2, (case["B"],), dtype=jnp.float32,
                                    minval=MIN_V * 1.2, maxval=MAX_V * 1.2)

        loss = hl_gauss_loss(logits, target, min_value=MIN_V, max_value=MAX_V,
                             n_logits=N_LOGITS, sigma=SIGMA,
                             block_rows=case["block_rows"])
        loss = jax.block_until_ready(loss)

        ref = _reference_loss(logits.astype(jnp.float32), target, min_value=MIN_V,
                              max_value=MAX_V, n_logits=N_LOGITS, sigma=SIGMA)
        assert jnp.allclose(loss, ref, rtol=2e-5, atol=2e-5), \
            (case, float(loss), float(ref))

    print("KERNEL_OK")
</pallas_src>

<mosaic_0001>
module attributes {stable_mosaic.version = 11 : i64} {
  func.func @kernel(%arg0: i32, %arg1: memref<2x128xf32, #tpu.memory_space<vmem>>, %arg2: memref<2x2xf32, #tpu.memory_space<vmem>>, %arg3: memref<1x128xf32, #tpu.memory_space<vmem>>, %arg4: memref<1x1x1xf32, #tpu.memory_space<vmem>>) attributes {dimension_semantics = [#tpu.dimension_semantics<parallel>], iteration_bounds = array<i64: 1>, scalar_prefetch = 0 : i64, scratch_operands = 0 : i64, tpu.core_type = #tpu.core_type<tc>, window_params = [{transform_indices = @transform_0, window_bounds = array<i64: 2, 128>}, {transform_indices = @transform_1, window_bounds = array<i64: 2, 2>}, {pipeline_mode = #tpu.pipeline_mode<synchronous>, transform_indices = @transform_2, window_bounds = array<i64: 1, 128>}, {transform_indices = @transform_3, window_bounds = array<i64: 1, 1, 1>}]} {
    %c0 = arith.constant 0 : index
    %c0_0 = arith.constant 0 : index
    %0 = vector.load %arg1[%c0, %c0_0] : memref<2x128xf32, #tpu.memory_space<vmem>>, vector<2x128xf32>
    %c0_1 = arith.constant 0 : index
    %c0_2 = arith.constant 0 : index
    %1 = vector.load %arg2[%c0_1, %c0_2] : memref<2x2xf32, #tpu.memory_space<vmem>>, vector<2x2xf32>
    %2 = vector.extract_strided_slice %1 {offsets = [0, 0], sizes = [2, 1], strides = [1, 1]} : vector<2x2xf32> to vector<2x1xf32>
    %3 = vector.extract_strided_slice %1 {offsets = [0, 1], sizes = [2, 1], strides = [1, 1]} : vector<2x2xf32> to vector<2x1xf32>
    %c0_3 = arith.constant 0 : index
    %c0_4 = arith.constant 0 : index
    %4 = vector.load %arg3[%c0_3, %c0_4] : memref<1x128xf32, #tpu.memory_space<vmem>>, vector<1x128xf32>
    %5 = vector.broadcast %4 : vector<1x128xf32> to vector<2x128xf32>
    %6 = vector.broadcast %2 : vector<2x1xf32> to vector<2x128xf32>
    %7 = arith.subf %5, %6 : vector<2x128xf32>
    %cst = arith.constant 60.3397789 : f32
    %8 = vector.broadcast %cst : f32 to vector<2x128xf32>
    %9 = arith.mulf %7, %8 : vector<2x128xf32>
    %10 = math.erf %9 : vector<2x128xf32>
    %c1_i32 = arith.constant 1 : i32
    %11 = tpu.dynamic_rotate %10 by %c1_i32 dim 1 : vector<2x128xf32>, i32 -> vector<2x128xf32>
    %12 = arith.subf %10, %11 : vector<2x128xf32>
    %cst_5 = arith.constant dense<0xFF800000> : vector<2xf32>
    %13 = vector.multi_reduction <maximumf>, %0, %cst_5 [1] : vector<2x128xf32> to vector<2xf32>
    %14 = vector.shape_cast %13 : vector<2xf32> to vector<2x1xf32>
    %15 = vector.broadcast %14 : vector<2x1xf32> to vector<2x128xf32>
    %16 = arith.subf %0, %15 : vector<2x128xf32>
    %17 = math.exp %16 : vector<2x128xf32>
    %cst_6 = arith.constant dense<0.000000e+00> : vector<2xf32>
    %18 = vector.multi_reduction <add>, %17, %cst_6 [1] : vector<2x128xf32> to vector<2xf32>
    %19 = vector.shape_cast %18 : vector<2xf32> to vector<2x1xf32>
    %20 = arith.mulf %12, %0 : vector<2x128xf32>
    %cst_7 = arith.constant dense<0.000000e+00> : vector<2xf32>
    %21 = vector.multi_reduction <add>, %20, %cst_7 [1] : vector<2x128xf32> to vector<2xf32>
    %22 = vector.shape_cast %21 : vector<2xf32> to vector<2x1xf32>
    %23 = math.log %19 : vector<2x1xf32>
    %24 = arith.addf %14, %23 : vector<2x1xf32>
    %25 = vector.extract_strided_slice %0 {offsets = [0, 0], sizes = [2, 1], strides = [1, 1]} : vector<2x128xf32> to vector<2x1xf32>
    %26 = arith.mulf %22, %3 : vector<2x1xf32>
    %27 = arith.subf %24, %26 : vector<2x1xf32>
    %28 = arith.subf %27, %25 : vector<2x1xf32>
    %29 = vector.shape_cast %28 : vector<2x1xf32> to vector<1x2x1xf32>
    %cst_8 = arith.constant dense<0.000000e+00> : vector<1xf32>
    %30 = vector.multi_reduction <add>, %29, %cst_8 [1, 2] : vector<1x2x1xf32> to vector<1xf32>
    %31 = vector.shape_cast %30 : vector<1xf32> to vector<1x1x1xf32>
    %32 = vector.extract %31[0, 0, 0] : f32 from vector<1x1x1xf32>
    %33 = vector.broadcast %32 : f32 to vector<1x1xf32>
    %34 = vector.shape_cast %33 : vector<1x1xf32> to vector<1x1x1xf32>
    %c0_9 = arith.constant 0 : index
    %c0_10 = arith.constant 0 : index
    %c0_11 = arith.constant 0 : index
    %35 = vector.load %arg4[%c0_9, %c0_10, %c0_11] : memref<1x1x1xf32, #tpu.memory_space<vmem>>, vector<1x1x1xf32>
    tpu.vector_store %arg4[%c0_9, %c0_10, %c0_11], %34 {strides = array<i32>} : memref<1x1x1xf32, #tpu.memory_space<vmem>>, vector<1x1x1xf32>,
    return
  }
  func.func @transform_0(%arg0: i32) -> (i32, i32) {
    %c0_i32 = arith.constant 0 : i32
    %c0_i32_0 = arith.constant 0 : i32
    return %arg0, %c0_i32 : i32, i32
  }
  func.func @transform_1(%arg0: i32) -> (i32, i32) {
    %c0_i32 = arith.constant 0 : i32
    %c0_i32_0 = arith.constant 0 : i32
    return %arg0, %c0_i32 : i32, i32
  }
  func.func @transform_2(%arg0: i32) -> (i32, i32) {
    %c0_i32 = arith.constant 0 : i32
    %c0_i32_0 = arith.constant 0 : i32
    %c0_i32_1 = arith.constant 0 : i32
    return %c0_i32, %c0_i32_0 : i32, i32
  }
  func.func @transform_3(%arg0: i32) -> (i32, i32, i32) {
    %c0_i32 = arith.constant 0 : i32
    %c0_i32_0 = arith.constant 0 : i32
    %c0_i32_1 = arith.constant 0 : i32
    return %arg0, %c0_i32, %c0_i32_0 : i32, i32, i32
  }
}

</mosaic_0001>

<llo_original>
// kernel: tpu_custom_call.1
$region0: #{tpu_custom_call.1}
  #allocation0 [shape = 'u32[]', space=smem, size = 0x4, offset = 0x4, fixed_abs, tag = 'smem constant byte address 0x4 - core index']
  #allocation1 [shape = 'u32[144,128]{1,0:T(1,128)}', space=vmem, size = 0x12000, scoped, tag = 'internal scratch']
  %s0 = inlined_call_operand.hbm [shape: f32[2,128], index: 0, kind: input, shape index: {}]
  %s1 = inlined_call_operand.vmem [shape: f32[2,2], index: 1, kind: input, shape index: {}]
  %s2 = inlined_call_operand.vmem [shape: f32[1,128], index: 2, kind: input, shape index: {}]
  %s3 = inlined_call_operand.hbm [shape: f32[1,1,1], index: 3, kind: output, shape index: {}]
  %s4 = sld [smem:[#allocation0]]
  $region26: #{tpu_custom_call.1} parent=0
    _
  %s6 = ssub.s32 1, %s4
  %s7 = scalar_select 0, %s6, %s4
  $region1: #{tpu_custom_call.1} parent=0
    #allocation2 [shape = 'u8[1024]{0}', space=vmem, size = 0x400, scoped, tag = 'input window, operand 0, single buffered']
    #allocation3 [shape = 's32[1]{0}', space=sflag, size = 0x4, scoped, tag = 'scoped memory for tpu_custom_call.1']
    #allocation4 [shape = 's32[1]{0}', space=sflag, size = 0x4, scoped, tag = 'scoped memory for tpu_custom_call.1']
    #allocation5 [shape = 'u8[512]{0}', space=vmem, size = 0x400, scoped, tag = 'output window, operand 0, single buffered']
    %8 = vsyncpa [#allocation3], 0
    %9 = vsyncpa [#allocation4], 0
    // Predicated region
    $region2: #{tpu_custom_call.1} parent=1 // pred_check
      _
    $region3: #{tpu_custom_call.1} parent=1 // pred_check_branch
      %11 = sbr.rel (0) target = $region5
    $region4: #{tpu_custom_call.1} parent=1 // pred_region
      %s13 = ssub.s32 32, 32
      %14 = vsyncadd [#allocation3], %s13
      %s16 = sshll.u32 [#allocation2], 4
      %s17 = int_to_ptr.vmem [resolvable:$true] %s16
      %19 = dma.hbm_to_vmem [thread:$0]  %s0, 32, %s17, [#allocation3]
    $region5: #{tpu_custom_call.1} parent=1 // pred_fallthru
      _
    // Predicated region
    $region6: #{tpu_custom_call.1} parent=1 // pred_check
      _
    $region7: #{tpu_custom_call.1} parent=1 // pred_check_branch
      %21 = sbr.rel (0) target = $region9
    $region8: #{tpu_custom_call.1} parent=1 // pred_region
      _
    $region9: #{tpu_custom_call.1} parent=1 // pred_fallthru
      _
    // Predicated region
    $region10: #{tpu_custom_call.1} parent=1 // pred_check
      _
    $region11: #{tpu_custom_call.1} parent=1 // pred_check_branch
      %23 = sbr.rel (0) target = $region13
    $region12: #{tpu_custom_call.1} parent=1 // pred_region
      _
    $region13: #{tpu_custom_call.1} parent=1 // pred_fallthru
      _
    // Predicated region
    $region14: #{tpu_custom_call.1} parent=1 // pred_check
      _
    $region15: #{tpu_custom_call.1} parent=1 // pred_check_branch
      %25 = sbr.rel (0) target = $region17
    $region16: #{tpu_custom_call.1} parent=1 // pred_region
      %26 = dma.done [#allocation3], 32
    $region17: #{tpu_custom_call.1} parent=1 // pred_fallthru
      _
    %v27 = vld [vmem:[#allocation2] sm:$0x3]
    %v28 = vld [vmem:[%s1] sm:$0x3]
    %v29 = vld [vmem:[%s2] sm:$0x1]
    %v31 = vlaneseq
    %v32 = vshrl.u32 %v31, 7
    %v33 = vsub.s32 0, %v32
    %v34 = vrot.slane %v29, %v33
    %37 = vset.pattern.permute.xlu0 0
    %38 = vperm.xlu0 %37, %v28
    %v39 = vpop.permute.xlu0 %38
    %v41 = vsub.f32 %v34, %v39
    %v42 = vmul.f32 %v41, 60.33978
    %v43 = verf.f32.pop %v42
    %44 = vrot.lane.b32.xlu0 %v43, 1
    %v45 = vpop.permute.xlu0 %44
    %v46 = vsub.f32 %v43, %v45
    %vm47 = vcmask 1041408
    %v48 = vsel %vm47, %v27, -inf
    %49 = vmax.xlane.f32.xlu0 %v48
    %v50 = vpop.xlane.xlu0 %49
    %v51 = vsub.f32 %v27, %v50
    %v52 = vmul.f32 %v51, 1.442695
    %v53 = vpow.pop %v52
    %v54 = vsel %vm47, %v53, 0.0
    %55 = vadd.xlane.f32.xlu0 %v54
    %v56 = vpop.xlane.xlu0 %55
    %v57 = vmul.f32 %v46, %v27
    %v58 = vsel %vm47, %v57, 0.0
    %59 = vadd.xlane.f32.xlu0 %v58
    %v60 = vpop.xlane.xlu0 %59
    %v61 = vlog2.pop %v56
    %v62 = vmul.f32 %v61, 0.6931472
    %v63 = vadd.f32 %v50, %v62
    %v64 = vmul.f32 %v60, %v28
    %v65 = vsub.f32 %v63, %v64
    %67 = vrot.lane.b32.xlu0 %v27, 1
    %v68 = vpop.permute.xlu0 %67
    %v70 = vsub.f32 %v65, %v68
    %72 = vrot.lane.b32.xlu0 %v70, 127
    %v73 = vpop.permute.xlu0 %72
    %vm75 = vcmask 1024
    %v76 = vsel %vm75, %v73, 0.0
    %77 = vadd.xlane.f32.xlu0 %v76
    %v78 = vpop.xlane.xlu0 %77
    %v79 = vrot.slane %v78, 4
    %v80 = vadd.f32 %v78, %v79
    %v81 = vrot.slane %v80, 2
    %v82 = vadd.f32 %v80, %v81
    %v83 = vrot.slane %v82, 1
    %v84 = vadd.f32 %v82, %v83
    %s85 = vtos %v84
    %v86 = vstv %s85
    %vm87 = vcmask 0
    %88 = vst.msk [vmem:[#allocation5] sm:$0x1] %vm87, %v86
    // Predicated region
    $region18: #{tpu_custom_call.1} parent=1 // pred_check
      _
    $region19: #{tpu_custom_call.1} parent=1 // pred_check_branch
      %90 = sbr.rel (0) target = $region21
    $region20: #{tpu_custom_call.1} parent=1 // pred_region
      %s92 = ssub.s32 16, 16
      %93 = vsyncadd [#allocation4], %s92
      %s95 = sshll.u32 [#allocation5], 4
      %s96 = int_to_ptr.vmem [resolvable:$true] %s95
      %98 = dma.vmem_to_hbm [thread:$0]  %s96, 16, %s3, [#allocation4]
    $region21: #{tpu_custom_call.1} parent=1 // pred_fallthru
      _
    // Predicated region
    $region22: #{tpu_custom_call.1} parent=1 // pred_check
      _
    $region23: #{tpu_custom_call.1} parent=1 // pred_check_branch
      %100 = sbr.rel (0) target = $region25
    $region24: #{tpu_custom_call.1} parent=1 // pred_region
      %101 = dma.done [#allocation4], 16
    $region25: #{tpu_custom_call.1} parent=1 // pred_fallthru
      _
    %102 = vsyncpa [#allocation3], 1
    %103 = vsyncpa [#allocation4], 1

</llo_original>
